<compile_context>
chip_gen: v5e
topology: v5e:2x2
jax: 0.10.0
libtpu: 0.0.40
codegen_flags: <defaults>
</compile_context>

<pallas_src>
import math

import jax
import jax.numpy as jnp
from jax.experimental import pallas as pl
from jax.experimental.pallas import tpu as pltpu

# Explicit scoped-VMEM limit (review item): safe on all of v5e/v6e/v7x and
# comfortably above what these tile sizes need.
VMEM_LIMIT_BYTES = 32 * 1024 * 1024


# ---------------------------------------------------------------------------
# Kernel A: per-head QKV projection (each projection computed exactly once)
# ---------------------------------------------------------------------------
def qkv_proj_kernel(x_ref, wq_ref, wk_ref, wv_ref, q_ref, k_ref, v_ref):
    h = pl.program_id(2)
    # Cast the activation tile to bf16 in VMEM (no extra HBM traffic); all
    # MXU operands are bf16, accumulation is f32.
    xt = x_ref[0].astype(jnp.bfloat16)                    # (TN, C)
    q = jnp.dot(xt, wq_ref[h], preferred_element_type=jnp.float32)
    k = jnp.dot(xt, wk_ref[h], preferred_element_type=jnp.float32)
    v = jnp.dot(xt, wv_ref[h], preferred_element_type=jnp.float32)
    q_ref[0, 0] = q.astype(q_ref.dtype)                   # (TN, D) bf16
    k_ref[0, 0] = k.astype(k_ref.dtype)
    v_ref[0, 0] = v.astype(v_ref.dtype)


# ---------------------------------------------------------------------------
# Kernel B: flash attention (online softmax), bf16 MXU operands, f32 scratch
# ---------------------------------------------------------------------------
def flash_attn_kernel(q_ref, k_ref, v_ref, o_ref, m_sc, l_sc, acc_sc):
    ki = pl.program_id(3)

    @pl.when(ki == 0)
    def _init():
        m_sc[...] = jnp.full(m_sc.shape, -jnp.inf, m_sc.dtype)
        l_sc[...] = jnp.zeros(l_sc.shape, l_sc.dtype)
        acc_sc[...] = jnp.zeros(acc_sc.shape, acc_sc.dtype)

    q = q_ref[0, 0]                                       # (TQ, D) bf16, pre-scaled
    k = k_ref[0, 0]                                       # (TKV, D) bf16
    v = v_ref[0, 0]                                       # (TKV, D) bf16

    # s = q @ k^T, contraction over the last dim of both (native MXU form).
    s = jax.lax.dot_general(q, k, (((1,), (1,)), ((), ())),
                            preferred_element_type=jnp.float32)   # (TQ, TKV)

    m_prev = m_sc[...]
    m_new = jnp.maximum(m_prev, jnp.max(s, axis=-1, keepdims=True))
    alpha = jnp.exp(m_prev - m_new)
    p = jnp.exp(s - m_new)
    l_sc[...] = alpha * l_sc[...] + jnp.sum(p, axis=-1, keepdims=True)
    acc_sc[...] = alpha * acc_sc[...] + jnp.dot(
        p.astype(jnp.bfloat16), v, preferred_element_type=jnp.float32)
    m_sc[...] = m_new

    @pl.when(ki == pl.num_programs(3) - 1)
    def _finalize():
        # Exact normalization (review correctness note: approx reciprocal on a
        # (TQ, 1) vector buys nothing).
        o_ref[0, 0] = (acc_sc[...] / l_sc[...]).astype(o_ref.dtype)


# ---------------------------------------------------------------------------
# Kernel C: output projection, all heads reduced in one step, resident weight
# ---------------------------------------------------------------------------
def out_proj_kernel(a_ref, w_ref, b_ref, o_ref):
    n_heads = a_ref.shape[1]
    tn = a_ref.shape[2]
    c = o_ref.shape[2]
    acc = jnp.zeros((tn, c), jnp.float32)
    for h in range(n_heads):                              # static unroll over heads
        acc = acc + jnp.dot(a_ref[0, h], w_ref[h],
                            preferred_element_type=jnp.float32)
    o_ref[0] = acc + b_ref[...]


# ---------------------------------------------------------------------------
# Wrapper
# ---------------------------------------------------------------------------
def mha_forward(x, wqkv, wproj, bproj, n_heads,
                *, q_tile=256, kv_tile=256, n_tile=256):
    """x: (B, N, C) f32.  wqkv: (3C, C) [PyTorch Linear layout].
       wproj: (C, C), bproj: (C,).  Returns (B, N, C) f32.
       Tile defaults are v7x-safe (64 MiB VMEM); 512 is fine on v5e/v6e."""
    B, N, C = x.shape
    H = n_heads
    assert C % H == 0
    D = C // H
    scale = 1.0 / math.sqrt(D)                            # SDPA default scale

    TQ = min(q_tile, N)
    TKV = min(kv_tile, N)
    TN = min(n_tile, N)
    assert N % TQ == 0 and N % TKV == 0 and N % TN == 0, "seq must tile evenly"

    # --- plain-JAX glue: reshape / cast weights (one-time, tiny) ----------
    # nn.Linear does x @ W.T; the 3C output dim is laid out as (3, H, D).
    w3 = jnp.transpose(wqkv.reshape(3, H, D, C), (0, 1, 3, 2))   # (3, H, C, D)
    wq = (w3[0].astype(jnp.float32) * scale).astype(jnp.bfloat16)  # fold 1/sqrt(D)
    wk = w3[1].astype(jnp.bfloat16)
    wv = w3[2].astype(jnp.bfloat16)
    wp = wproj.T.reshape(H, D, C).astype(jnp.bfloat16)    # per-head out-proj slabs
    bias2d = bproj.reshape(1, C).astype(jnp.float32)

    # --- Kernel A: QKV projection -----------------------------------------
    qh, kh, vh = pl.pallas_call(
        qkv_proj_kernel,
        out_shape=(jax.ShapeDtypeStruct((B, H, N, D), jnp.bfloat16),) * 3,
        grid_spec=pltpu.PrefetchScalarGridSpec(
            num_scalar_prefetch=0,
            grid=(B, N // TN, H),
            in_specs=[
                # x tile: block index constant across h -> DMA'd once, reused.
                pl.BlockSpec((1, TN, C), lambda b, nt, h: (b, nt, 0)),
                # Weights: VMEM-resident (constant index_map), indexed by h inside.
                pl.BlockSpec((H, C, D), lambda b, nt, h: (0, 0, 0)),
                pl.BlockSpec((H, C, D), lambda b, nt, h: (0, 0, 0)),
                pl.BlockSpec((H, C, D), lambda b, nt, h: (0, 0, 0)),
            ],
            out_specs=[
                pl.BlockSpec((1, 1, TN, D), lambda b, nt, h: (b, h, nt, 0)),
                pl.BlockSpec((1, 1, TN, D), lambda b, nt, h: (b, h, nt, 0)),
                pl.BlockSpec((1, 1, TN, D), lambda b, nt, h: (b, h, nt, 0)),
            ],
        ),
        compiler_params=pltpu.CompilerParams(
            dimension_semantics=("parallel", "parallel", "arbitrary"),
            vmem_limit_bytes=VMEM_LIMIT_BYTES),
        cost_estimate=pl.CostEstimate(
            flops=2 * B * N * C * 3 * C,
            transcendentals=0,
            bytes_accessed=4 * B * N * C + 2 * 3 * C * C + 2 * 3 * B * N * C),
    )(x, wq, wk, wv)

    # --- Kernel B: flash attention -----------------------------------------
    attn = pl.pallas_call(
        flash_attn_kernel,
        out_shape=jax.ShapeDtypeStruct((B, H, N, D), jnp.bfloat16),
        grid_spec=pltpu.PrefetchScalarGridSpec(
            num_scalar_prefetch=0,
            grid=(B, H, N // TQ, N // TKV),
            in_specs=[
                pl.BlockSpec((1, 1, TQ, D), lambda b, h, qi, ki: (b, h, qi, 0)),
                pl.BlockSpec((1, 1, TKV, D), lambda b, h, qi, ki: (b, h, ki, 0)),
                pl.BlockSpec((1, 1, TKV, D), lambda b, h, qi, ki: (b, h, ki, 0)),
            ],
            out_specs=pl.BlockSpec((1, 1, TQ, D),
                                   lambda b, h, qi, ki: (b, h, qi, 0)),
            scratch_shapes=[
                pltpu.VMEM((TQ, 1), jnp.float32),   # running max m
                pltpu.VMEM((TQ, 1), jnp.float32),   # running denom l
                pltpu.VMEM((TQ, D), jnp.float32),   # running accumulator
            ],
        ),
        compiler_params=pltpu.CompilerParams(
            dimension_semantics=("parallel", "parallel", "parallel", "arbitrary"),
            vmem_limit_bytes=VMEM_LIMIT_BYTES),
        cost_estimate=pl.CostEstimate(
            flops=4 * B * H * N * N * D,
            transcendentals=B * H * N * N,
            bytes_accessed=2 * B * N * C * (2 + 2 * (N // TQ))),
    )(qh, kh, vh)

    # --- Kernel C: output projection (head reduction inside one step) ------
    out = pl.pallas_call(
        out_proj_kernel,
        out_shape=jax.ShapeDtypeStruct((B, N, C), jnp.float32),
        grid_spec=pltpu.PrefetchScalarGridSpec(
            num_scalar_prefetch=0,
            grid=(B, N // TN),
            in_specs=[
                pl.BlockSpec((1, H, TN, D), lambda b, nt: (b, 0, nt, 0)),  # attn
                pl.BlockSpec((H, D, C), lambda b, nt: (0, 0, 0)),          # resident Wp
                pl.BlockSpec((1, C), lambda b, nt: (0, 0)),                # bias
            ],
            out_specs=pl.BlockSpec((1, TN, C), lambda b, nt: (b, nt, 0)),
        ),
        compiler_params=pltpu.CompilerParams(
            dimension_semantics=("parallel", "parallel"),
            vmem_limit_bytes=VMEM_LIMIT_BYTES),
        cost_estimate=pl.CostEstimate(
            flops=2 * B * N * C * C,
            transcendentals=0,
            bytes_accessed=2 * B * N * C + 2 * C * C + 4 * C + 4 * B * N * C),
    )(attn, wp, bias2d)

    return out


# ---------------------------------------------------------------------------
# Pure-JAX reference (correctness check)
# ---------------------------------------------------------------------------
def mha_reference(x, wqkv, wproj, bproj, n_heads):
    B, N, C = x.shape
    H = n_heads
    D = C // H
    qkv = x @ wqkv.T                                         # (B, N, 3C)
    qkv = qkv.reshape(B, N, 3, H, D).transpose(2, 0, 3, 1, 4)
    q, k, v = qkv[0], qkv[1], qkv[2]                         # (B, H, N, D)
    scale = 1.0 / math.sqrt(D)
    s = jnp.einsum("bhnd,bhmd->bhnm", q, k) * scale
    p = jax.nn.softmax(s, axis=-1)
    o = jnp.einsum("bhnm,bhmd->bhnd", p, v)
    o = o.transpose(0, 2, 1, 3).reshape(B, N, C)
    return o @ wproj.T + bproj


# ---------------------------------------------------------------------------
if __name__ == "__main__":
    # Small but non-trivial: multiple batches/heads, and (with 128-wide tiles)
    # multiple q-tiles, kv-tiles and n-tiles, so the ki>0 online-softmax path
    # and the in-step head reduction are actually exercised.
    B, N, C, H = 2, 256, 128, 4                              # head dim D = 32

    key = jax.random.PRNGKey(0)
    kx, kqkv, kp, kb = jax.random.split(key, 4)

    x = jax.random.normal(kx, (B, N, C), dtype=jnp.float32)
    wqkv = jax.random.normal(kqkv, (3 * C, C), dtype=jnp.float32) * 0.02
    wproj = jax.random.normal(kp, (C, C), dtype=jnp.float32) * 0.02
    bproj = jax.random.normal(kb, (C,), dtype=jnp.float32) * 0.02

    out = mha_forward(x, wqkv, wproj, bproj, n_heads=H,
                      q_tile=128, kv_tile=128, n_tile=128)
    out = jax.block_until_ready(out)

    ref = mha_reference(x, wqkv, wproj, bproj, n_heads=H)
    assert out.shape == (B, N, C)
    max_err = float(jnp.max(jnp.abs(out - ref)))
    # bf16 MXU operands + bf16 attention intermediate -> slightly loosened tol.
    assert jnp.allclose(out, ref, atol=2e-2, rtol=2e-2), (
        f"mismatch vs reference (max abs err {max_err})")

    print("KERNEL_OK")
</pallas_src>

<mosaic_0001>
module attributes {stable_mosaic.version = 11 : i64} {
  func.func @qkv_proj_kernel(%arg0: i32, %arg1: i32, %arg2: i32, %arg3: memref<1x128x128xf32, #tpu.memory_space<vmem>>, %arg4: memref<4x128x32xbf16, #tpu.memory_space<vmem>>, %arg5: memref<4x128x32xbf16, #tpu.memory_space<vmem>>, %arg6: memref<4x128x32xbf16, #tpu.memory_space<vmem>>, %arg7: memref<1x1x128x32xbf16, #tpu.memory_space<vmem>>, %arg8: memref<1x1x128x32xbf16, #tpu.memory_space<vmem>>, %arg9: memref<1x1x128x32xbf16, #tpu.memory_space<vmem>>) attributes {dimension_semantics = [#tpu.dimension_semantics<parallel>, #tpu.dimension_semantics<parallel>, #tpu.dimension_semantics<arbitrary>], iteration_bounds = array<i64: 2, 2, 4>, scalar_prefetch = 0 : i64, scratch_operands = 0 : i64, tpu.core_type = #tpu.core_type<tc>, window_params = [{transform_indices = @transform_0, window_bounds = array<i64: 1, 128, 128>}, {pipeline_mode = #tpu.pipeline_mode<synchronous>, transform_indices = @transform_1, window_bounds = array<i64: 4, 128, 32>}, {pipeline_mode = #tpu.pipeline_mode<synchronous>, transform_indices = @transform_2, window_bounds = array<i64: 4, 128, 32>}, {pipeline_mode = #tpu.pipeline_mode<synchronous>, transform_indices = @transform_3, window_bounds = array<i64: 4, 128, 32>}, {transform_indices = @transform_4, window_bounds = array<i64: 1, 1, 128, 32>}, {transform_indices = @transform_5, window_bounds = array<i64: 1, 1, 128, 32>}, {transform_indices = @transform_6, window_bounds = array<i64: 1, 1, 128, 32>}]} {
    %c0 = arith.constant 0 : index
    %c0_0 = arith.constant 0 : index
    %c0_1 = arith.constant 0 : index
    %0 = vector.load %arg3[%c0, %c0_0, %c0_1] : memref<1x128x128xf32, #tpu.memory_space<vmem>>, vector<1x128x128xf32>
    %1 = vector.shape_cast %0 : vector<1x128x128xf32> to vector<128x128xf32>
    %2 = arith.truncf %1 : vector<128x128xf32> to vector<128x128xbf16>
    %3 = arith.index_cast %arg2 : i32 to index
    %c0_2 = arith.constant 0 : index
    %c0_3 = arith.constant 0 : index
    %4 = vector.load %arg4[%3, %c0_2, %c0_3] : memref<4x128x32xbf16, #tpu.memory_space<vmem>>, vector<1x128x32xbf16>
    %5 = vector.shape_cast %4 : vector<1x128x32xbf16> to vector<128x32xbf16>
    %cst = arith.constant dense<0.000000e+00> : vector<128x32xf32>
    %6 = tpu.matmul %2, %5, %cst {dimension_numbers = #tpu.dot_dimension_numbers<[1], [0], [0], [1], [0, 0, 1, 1], [], []>} : vector<128x128xbf16>, vector<128x32xbf16>, vector<128x32xf32> -> vector<128x32xf32>
    %7 = arith.index_cast %arg2 : i32 to index
    %c0_4 = arith.constant 0 : index
    %c0_5 = arith.constant 0 : index
    %8 = vector.load %arg5[%7, %c0_4, %c0_5] : memref<4x128x32xbf16, #tpu.memory_space<vmem>>, vector<1x128x32xbf16>
    %9 = vector.shape_cast %8 : vector<1x128x32xbf16> to vector<128x32xbf16>
    %cst_6 = arith.constant dense<0.000000e+00> : vector<128x32xf32>
    %10 = tpu.matmul %2, %9, %cst_6 {dimension_numbers = #tpu.dot_dimension_numbers<[1], [0], [0], [1], [0, 0, 1, 1], [], []>} : vector<128x128xbf16>, vector<128x32xbf16>, vector<128x32xf32> -> vector<128x32xf32>
    %11 = arith.index_cast %arg2 : i32 to index
    %c0_7 = arith.constant 0 : index
    %c0_8 = arith.constant 0 : index
    %12 = vector.load %arg6[%11, %c0_7, %c0_8] : memref<4x128x32xbf16, #tpu.memory_space<vmem>>, vector<1x128x32xbf16>
    %13 = vector.shape_cast %12 : vector<1x128x32xbf16> to vector<128x32xbf16>
    %cst_9 = arith.constant dense<0.000000e+00> : vector<128x32xf32>
    %14 = tpu.matmul %2, %13, %cst_9 {dimension_numbers = #tpu.dot_dimension_numbers<[1], [0], [0], [1], [0, 0, 1, 1], [], []>} : vector<128x128xbf16>, vector<128x32xbf16>, vector<128x32xf32> -> vector<128x32xf32>
    %15 = arith.truncf %6 : vector<128x32xf32> to vector<128x32xbf16>
    %c0_10 = arith.constant 0 : index
    %c0_11 = arith.constant 0 : index
    %c0_12 = arith.constant 0 : index
    %c0_13 = arith.constant 0 : index
    %16 = vector.load %arg7[%c0_10, %c0_11, %c0_12, %c0_13] : memref<1x1x128x32xbf16, #tpu.memory_space<vmem>>, vector<1x1x128x32xbf16>
    %17 = vector.shape_cast %16 : vector<1x1x128x32xbf16> to vector<128x32xbf16>
    %18 = vector.shape_cast %15 : vector<128x32xbf16> to vector<1x1x128x32xbf16>
    tpu.vector_store %arg7[%c0_10, %c0_11, %c0_12, %c0_13], %18 {strides = array<i32>} : memref<1x1x128x32xbf16, #tpu.memory_space<vmem>>, vector<1x1x128x32xbf16>,
    %19 = arith.truncf %10 : vector<128x32xf32> to vector<128x32xbf16>
    %c0_14 = arith.constant 0 : index
    %c0_15 = arith.constant 0 : index
    %c0_16 = arith.constant 0 : index
    %c0_17 = arith.constant 0 : index
    %20 = vector.load %arg8[%c0_14, %c0_15, %c0_16, %c0_17] : memref<1x1x128x32xbf16, #tpu.memory_space<vmem>>, vector<1x1x128x32xbf16>
    %21 = vector.shape_cast %20 : vector<1x1x128x32xbf16> to vector<128x32xbf16>
    %22 = vector.shape_cast %19 : vector<128x32xbf16> to vector<1x1x128x32xbf16>
    tpu.vector_store %arg8[%c0_14, %c0_15, %c0_16, %c0_17], %22 {strides = array<i32>} : memref<1x1x128x32xbf16, #tpu.memory_space<vmem>>, vector<1x1x128x32xbf16>,
    %23 = arith.truncf %14 : vector<128x32xf32> to vector<128x32xbf16>
    %c0_18 = arith.constant 0 : index
    %c0_19 = arith.constant 0 : index
    %c0_20 = arith.constant 0 : index
    %c0_21 = arith.constant 0 : index
    %24 = vector.load %arg9[%c0_18, %c0_19, %c0_20, %c0_21] : memref<1x1x128x32xbf16, #tpu.memory_space<vmem>>, vector<1x1x128x32xbf16>
    %25 = vector.shape_cast %24 : vector<1x1x128x32xbf16> to vector<128x32xbf16>
    %26 = vector.shape_cast %23 : vector<128x32xbf16> to vector<1x1x128x32xbf16>
    tpu.vector_store %arg9[%c0_18, %c0_19, %c0_20, %c0_21], %26 {strides = array<i32>} : memref<1x1x128x32xbf16, #tpu.memory_space<vmem>>, vector<1x1x128x32xbf16>,
    return
  }
  func.func @transform_0(%arg0: i32, %arg1: i32, %arg2: i32) -> (i32, i32, i32) {
    %c0_i32 = arith.constant 0 : i32
    %c0_i32_0 = arith.constant 0 : i32
    return %arg0, %arg1, %c0_i32 : i32, i32, i32
  }
  func.func @transform_1(%arg0: i32, %arg1: i32, %arg2: i32) -> (i32, i32, i32) {
    %c0_i32 = arith.constant 0 : i32
    %c0_i32_0 = arith.constant 0 : i32
    %c0_i32_1 = arith.constant 0 : i32
    %c0_i32_2 = arith.constant 0 : i32
    return %c0_i32, %c0_i32_0, %c0_i32_1 : i32, i32, i32
  }
  func.func @transform_2(%arg0: i32, %arg1: i32, %arg2: i32) -> (i32, i32, i32) {
    %c0_i32 = arith.constant 0 : i32
    %c0_i32_0 = arith.constant 0 : i32
    %c0_i32_1 = arith.constant 0 : i32
    %c0_i32_2 = arith.constant 0 : i32
    return %c0_i32, %c0_i32_0, %c0_i32_1 : i32, i32, i32
  }
  func.func @transform_3(%arg0: i32, %arg1: i32, %arg2: i32) -> (i32, i32, i32) {
    %c0_i32 = arith.constant 0 : i32
    %c0_i32_0 = arith.constant 0 : i32
    %c0_i32_1 = arith.constant 0 : i32
    %c0_i32_2 = arith.constant 0 : i32
    return %c0_i32, %c0_i32_0, %c0_i32_1 : i32, i32, i32
  }
  func.func @transform_4(%arg0: i32, %arg1: i32, %arg2: i32) -> (i32, i32, i32, i32) {
    %c0_i32 = arith.constant 0 : i32
    %c0_i32_0 = arith.constant 0 : i32
    return %arg0, %arg2, %arg1, %c0_i32 : i32, i32, i32, i32
  }
  func.func @transform_5(%arg0: i32, %arg1: i32, %arg2: i32) -> (i32, i32, i32, i32) {
    %c0_i32 = arith.constant 0 : i32
    %c0_i32_0 = arith.constant 0 : i32
    return %arg0, %arg2, %arg1, %c0_i32 : i32, i32, i32, i32
  }
  func.func @transform_6(%arg0: i32, %arg1: i32, %arg2: i32) -> (i32, i32, i32, i32) {
    %c0_i32 = arith.constant 0 : i32
    %c0_i32_0 = arith.constant 0 : i32
    return %arg0, %arg2, %arg1, %c0_i32 : i32, i32, i32, i32
  }
}

</mosaic_0001>

<llo_original>
// kernel: tpu_custom_call.1
$region0: #{tpu_custom_call.1}
  #allocation0 [shape = 'u32[]', space=smem, size = 0x4, offset = 0x4, fixed_abs, tag = 'smem constant byte address 0x4 - core index']
  #allocation1 [shape = 'u32[72,128]{1,0:T(1,128)}', space=vmem, size = 0x9000, scoped, tag = 'internal scratch']
  %s0 = inlined_call_operand.vmem [shape: f32[2,256,128], index: 0, kind: input, shape index: {}]
  %s1 = inlined_call_operand.vmem [shape: bf16[4,128,32], index: 1, kind: input, shape index: {}]
  %s2 = inlined_call_operand.vmem [shape: bf16[4,128,32], index: 2, kind: input, shape index: {}]
  %s3 = inlined_call_operand.vmem [shape: bf16[4,128,32], index: 3, kind: input, shape index: {}]
  %s4 = inlined_call_operand.vmem [shape: bf16[2,4,256,32], index: 4, kind: output, shape index: {0}]
  %s5 = inlined_call_operand.vmem [shape: bf16[2,4,256,32], index: 5, kind: output, shape index: {1}]
  %s6 = inlined_call_operand.vmem [shape: bf16[2,4,256,32], index: 6, kind: output, shape index: {2}]
  %7 = xla_tuple %s4, %s5, %s6
  %s8 = sld [smem:[#allocation0]]
  $region65: #{tpu_custom_call.1} parent=0
    _
  %s10 = ssub.s32 1, %s8
  %s11 = scalar_select 0, %s10, %s8
  loop: start=0, step=1, limit=18
  $region2: #{tpu_custom_call.1} parent=0 // loop_pre_header
    _
  $region3: #{tpu_custom_call.1} parent=0 // loop_header
    %s13 = sphi 0, %s17
    %p14 = scmp.ge.s32.totalorder %s13, 18
    %s20 = sphi 0, %s39
    %s21 = sphi 0, %s35
    %s22 = sphi 0, %s31
    %s23 = sphi 0, %s20
    %s24 = sphi 0, %s21
    %s25 = sphi 0, %s22
    %s26 = sphi 0, %s23
    %s27 = sphi 0, %s24
    %s28 = sphi 0, %s25
    %s44 = sphi 0, %s46
    %s47 = sphi 0, %s44
    %s48 = sphi 0, %s47
    %s64 = sphi 0, %s48
    %s68 = sphi 0, %s68
    %s70 = sphi 0, %s68
    %s71 = sphi 0, %s70
    %s85 = sphi 0, %s71
    %s89 = sphi 0, %s89
    %s91 = sphi 0, %s89
    %s92 = sphi 0, %s91
    %s106 = sphi 0, %s92
    %s110 = sphi 0, %s110
    %s112 = sphi 0, %s110
    %s113 = sphi 0, %s112
    %s127 = sphi 0, %s113
    %s137 = sphi 0, %s139
    %s140 = sphi 0, %s137
    %s141 = sphi 0, %s140
    %s157 = sphi 0, %s141
    %s167 = sphi 0, %s169
    %s170 = sphi 0, %s167
    %s171 = sphi 0, %s170
    %s187 = sphi 0, %s171
    %s197 = sphi 0, %s199
    %s200 = sphi 0, %s197
    %s201 = sphi 0, %s200
    %s217 = sphi 0, %s201
  $region4: #{tpu_custom_call.1} parent=0 // loop_header_branch
    %16 = sbr.rel (%p14) target = $region8
  $region5: #{tpu_custom_call.1} parent=0 // loop_body
    %s18 = ssub.s32 %s13, 1
    %s19 = ssub.s32 %s13, 2
    %s29 = sadd.s32 1, %s22
    %p30 = scmp.ge.s32.totalorder %s29, 4
    %s31 = scalar_select %p30, 0, %s29
    %s32 = sadd.s32 1, %s21
    %s33 = scalar_select %p30, %s32, %s21
    %p34 = scmp.ge.s32.totalorder %s33, 2
    %s35 = scalar_select %p34, 0, %s33
    %s36 = sadd.s32 1, %s20
    %s37 = scalar_select %p34, %s36, %s20
    %p38 = scmp.ge.s32.totalorder %s37, 2
    %s39 = scalar_select %p38, 0, %s37
    %s40 = ssub.s32 %s20, %s39
    %s41 = ssub.s32 %s21, %s35
    %s42 = sor.u32 %s40, %s41
    %p43 = scmp.eq.s32.totalorder %s42, 0
    %s45 = sadd.s32 %s44, 1
    %s46 = scalar_select %p43, %s44, %s45
    %p49 = pneg %p43
    %p50 = scmp.eq.s32.totalorder %s13, 15
    %p51 = por %p49, %p50
    %p52 = scmp.ne.s32.totalorder %s44, %s47
    %p53 = scmp.eq.s32.totalorder %s13, 0
    %p54 = por %p52, %p53
    %p55 = scmp.ne.s32.totalorder %s44, %s47
    %p56 = scmp.eq.s32.totalorder %s18, 15
    %p57 = por %p55, %p56
    %p58 = scmp.ne.s32.totalorder %s47, %s48
    %p59 = scmp.eq.s32.totalorder %s18, 0
    %p60 = por %p58, %p59
    %p61 = scmp.ne.s32.totalorder %s47, %s48
    %p62 = scmp.eq.s32.totalorder %s19, 15
    %p63 = por %p61, %p62
    %p65 = scmp.ne.s32.totalorder %s48, %s64
    %p66 = scmp.eq.s32.totalorder %s19, 0
    %p67 = por %p65, %p66
    %s69 = sadd.s32 %s68, 1
    %p72 = scmp.eq.s32.totalorder %s13, 15
    %p73 = scmp.ne.s32.totalorder %s68, %s70
    %p74 = scmp.eq.s32.totalorder %s13, 0
    %p75 = por %p73, %p74
    %p76 = scmp.ne.s32.totalorder %s68, %s70
    %p77 = scmp.eq.s32.totalorder %s18, 15
    %p78 = por %p76, %p77
    %p79 = scmp.ne.s32.totalorder %s70, %s71
    %p80 = scmp.eq.s32.totalorder %s18, 0
    %p81 = por %p79, %p80
    %p82 = scmp.ne.s32.totalorder %s70, %s71
    %p83 = scmp.eq.s32.totalorder %s19, 15
    %p84 = por %p82, %p83
    %p86 = scmp.ne.s32.totalorder %s71, %s85
    %p87 = scmp.eq.s32.totalorder %s19, 0
    %p88 = por %p86, %p87
    %s90 = sadd.s32 %s89, 1
    %p93 = scmp.eq.s32.totalorder %s13, 15
    %p94 = scmp.ne.s32.totalorder %s89, %s91
    %p95 = scmp.eq.s32.totalorder %s13, 0
    %p96 = por %p94, %p95
    %p97 = scmp.ne.s32.totalorder %s89, %s91
    %p98 = scmp.eq.s32.totalorder %s18, 15
    %p99 = por %p97, %p98
    %p100 = scmp.ne.s32.totalorder %s91, %s92
    %p101 = scmp.eq.s32.totalorder %s18, 0
    %p102 = por %p100, %p101
    %p103 = scmp.ne.s32.totalorder %s91, %s92
    %p104 = scmp.eq.s32.totalorder %s19, 15
    %p105 = por %p103, %p104
    %p107 = scmp.ne.s32.totalorder %s92, %s106
    %p108 = scmp.eq.s32.totalorder %s19, 0
    %p109 = por %p107, %p108
    %s111 = sadd.s32 %s110, 1
    %p114 = scmp.eq.s32.totalorder %s13, 15
    %p115 = scmp.ne.s32.totalorder %s110, %s112
    %p116 = scmp.eq.s32.totalorder %s13, 0
    %p117 = por %p115, %p116
    %p118 = scmp.ne.s32.totalorder %s110, %s112
    %p119 = scmp.eq.s32.totalorder %s18, 15
    %p120 = por %p118, %p119
    %p121 = scmp.ne.s32.totalorder %s112, %s113
    %p122 = scmp.eq.s32.totalorder %s18, 0
    %p123 = por %p121, %p122
    %p124 = scmp.ne.s32.totalorder %s112, %s113
    %p125 = scmp.eq.s32.totalorder %s19, 15
    %p126 = por %p124, %p125
    %p128 = scmp.ne.s32.totalorder %s113, %s127
    %p129 = scmp.eq.s32.totalorder %s19, 0
    %p130 = por %p128, %p129
    %s131 = ssub.s32 %s20, %s39
    %s132 = ssub.s32 %s22, %s31
    %s133 = sor.u32 %s131, %s132
    %s134 = ssub.s32 %s21, %s35
    %s135 = sor.u32 %s133, %s134
    %p136 = scmp.eq.s32.totalorder %s135, 0
    %s138 = sadd.s32 %s137, 1
    %s139 = scalar_select %p136, %s137, %s138
    %p142 = pneg %p136
    %p143 = scmp.eq.s32.totalorder %s13, 15
    %p144 = por %p142, %p143
    %p145 = scmp.ne.s32.totalorder %s137, %s140
    %p146 = scmp.eq.s32.totalorder %s13, 0
    %p147 = por %p145, %p146
    %p148 = scmp.ne.s32.totalorder %s137, %s140
    %p149 = scmp.eq.s32.totalorder %s18, 15
    %p150 = por %p148, %p149
    %p151 = scmp.ne.s32.totalorder %s140, %s141
    %p152 = scmp.eq.s32.totalorder %s18, 0
    %p153 = por %p151, %p152
    %p154 = scmp.ne.s32.totalorder %s140, %s141
    %p155 = scmp.eq.s32.totalorder %s19, 15
    %p156 = por %p154, %p155
    %p158 = scmp.ne.s32.totalorder %s141, %s157
    %p159 = scmp.eq.s32.totalorder %s19, 0
    %p160 = por %p158, %p159
    %s161 = ssub.s32 %s20, %s39
    %s162 = ssub.s32 %s22, %s31
    %s163 = sor.u32 %s161, %s162
    %s164 = ssub.s32 %s21, %s35
    %s165 = sor.u32 %s163, %s164
    %p166 = scmp.eq.s32.totalorder %s165, 0
    %s168 = sadd.s32 %s167, 1
    %s169 = scalar_select %p166, %s167, %s168
    %p172 = pneg %p166
    %p173 = scmp.eq.s32.totalorder %s13, 15
    %p174 = por %p172, %p173
    %p175 = scmp.ne.s32.totalorder %s167, %s170
    %p176 = scmp.eq.s32.totalorder %s13, 0
    %p177 = por %p175, %p176
    %p178 = scmp.ne.s32.totalorder %s167, %s170
    %p179 = scmp.eq.s32.totalorder %s18, 15
    %p180 = por %p178, %p179
    %p181 = scmp.ne.s32.totalorder %s170, %s171
    %p182 = scmp.eq.s32.totalorder %s18, 0
    %p183 = por %p181, %p182
    %p184 = scmp.ne.s32.totalorder %s170, %s171
    %p185 = scmp.eq.s32.totalorder %s19, 15
    %p186 = por %p184, %p185
    %p188 = scmp.ne.s32.totalorder %s171, %s187
    %p189 = scmp.eq.s32.totalorder %s19, 0
    %p190 = por %p188, %p189
    %s191 = ssub.s32 %s20, %s39
    %s192 = ssub.s32 %s22, %s31
    %s193 = sor.u32 %s191, %s192
    %s194 = ssub.s32 %s21, %s35
    %s195 = sor.u32 %s193, %s194
    %p196 = scmp.eq.s32.totalorder %s195, 0
    %s198 = sadd.s32 %s197, 1
    %s199 = scalar_select %p196, %s197, %s198
    %p202 = pneg %p196
    %p203 = scmp.eq.s32.totalorder %s13, 15
    %p204 = por %p202, %p203
    %p205 = scmp.ne.s32.totalorder %s197, %s200
    %p206 = scmp.eq.s32.totalorder %s13, 0
    %p207 = por %p205, %p206
    %p208 = scmp.ne.s32.totalorder %s197, %s200
    %p209 = scmp.eq.s32.totalorder %s18, 15
    %p210 = por %p208, %p209
    %p211 = scmp.ne.s32.totalorder %s200, %s201
    %p212 = scmp.eq.s32.totalorder %s18, 0
    %p213 = por %p211, %p212
    %p214 = scmp.ne.s32.totalorder %s200, %s201
    %p215 = scmp.eq.s32.totalorder %s19, 15
    %p216 = por %p214, %p215
    %p218 = scmp.ne.s32.totalorder %s201, %s217
    %p219 = scmp.eq.s32.totalorder %s19, 0
    %p220 = por %p218, %p219
    %p221 = scmp.le.s32.totalorder 1, %s13
    %p222 = scmp.lt.s32.totalorder %s13, 17
    %p223 = pnand %p221, %p222
    %p224 = pneg %p223
    // Predicated region
    $region9: #{tpu_custom_call.1} parent=5 // pred_check
      _
    $region10: #{tpu_custom_call.1} parent=5 // pred_check_branch
      %226 = sbr.rel (%p223) target = $region12
    $region11: #{tpu_custom_call.1} parent=5 // pred_region
      %s227 = ssub.s32 %s13, 1
      // Predicated region
      $region13: #{tpu_custom_call.1} parent=11 // pred_check
        %p228 = pneg %p81
      $region14: #{tpu_custom_call.1} parent=11 // pred_check_branch
        %230 = sbr.rel (%p228) target = $region16
      $region15: #{tpu_custom_call.1} parent=11 // pred_region
        _
      $region16: #{tpu_custom_call.1} parent=11 // pred_fallthru
        _
      // Predicated region
      $region17: #{tpu_custom_call.1} parent=11 // pred_check
        %p231 = pneg %p102
      $region18: #{tpu_custom_call.1} parent=11 // pred_check_branch
        %233 = sbr.rel (%p231) target = $region20
      $region19: #{tpu_custom_call.1} parent=11 // pred_region
        _
      $region20: #{tpu_custom_call.1} parent=11 // pred_fallthru
        _
      // Predicated region
      $region21: #{tpu_custom_call.1} parent=11 // pred_check
        %p234 = pneg %p123
      $region22: #{tpu_custom_call.1} parent=11 // pred_check_branch
        %236 = sbr.rel (%p234) target = $region24
      $region23: #{tpu_custom_call.1} parent=11 // pred_region
        _
      $region24: #{tpu_custom_call.1} parent=11 // pred_fallthru
        _
    $region12: #{tpu_custom_call.1} parent=5 // pred_fallthru
      _
    %p237 = scmp.lt.s32.totalorder %s13, 16
    // Predicated region
    $region25: #{tpu_custom_call.1} parent=5 // pred_check
      %p238 = pneg %p237
    $region26: #{tpu_custom_call.1} parent=5 // pred_check_branch
      %240 = sbr.rel (%p238) target = $region28
    $region27: #{tpu_custom_call.1} parent=5 // pred_region
      // Predicated region
      $region29: #{tpu_custom_call.1} parent=27 // pred_check
        %p241 = pneg %p54
      $region30: #{tpu_custom_call.1} parent=27 // pred_check_branch
        %243 = sbr.rel (%p241) target = $region32
      $region31: #{tpu_custom_call.1} parent=27 // pred_region
        %s244 = smul.u32 16, %s21
        %p245 = scmp.lt.s32.totalorder %s20, 1
        %s246 = scalar_select %p245, %s20, 1
        %p247 = scmp.lt.s32.totalorder %s244, 31
        %s248 = scalar_select %p247, %s244, 31
        %s249 = smul.addr %s246, 32
        %s250 = sadd.s32 %s248, %s249
        %s251 = smul.addr %s250, 8
        %s252 = scalar_lea.vmem %s0, %s251
        %s253 = smul.u32 16, %s21
      $region32: #{tpu_custom_call.1} parent=27 // pred_fallthru
        _
    $region28: #{tpu_custom_call.1} parent=5 // pred_fallthru
      _
    %p254 = scmp.le.s32.totalorder 1, %s13
    %p255 = scmp.lt.s32.totalorder %s13, 17
    %p256 = pnand %p254, %p255
    %p257 = pneg %p256
    // Predicated region
    $region33: #{tpu_custom_call.1} parent=5 // pred_check
      _
    $region34: #{tpu_custom_call.1} parent=5 // pred_check_branch
      %259 = sbr.rel (%p256) target = $region36
    $region35: #{tpu_custom_call.1} parent=5 // pred_region
      %s260 = ssub.s32 %s13, 1
      %s261 = smul.u32 16, %s24
      %p262 = scmp.lt.s32.totalorder %s23, 1
      %s263 = scalar_select %p262, %s23, 1
      %p264 = scmp.lt.s32.totalorder %s261, 31
      %s265 = scalar_select %p264, %s261, 31
      %s266 = smul.addr %s263, 32
      %s267 = sadd.s32 %s265, %s266
      %s268 = smul.addr %s267, 8
      %s269 = scalar_lea.vmem %s0, %s268
      %p270 = pneg %p60
      %p271 = pneg %p57
      %p272 = pneg %p81
      %p273 = pneg %p78
      %p274 = pneg %p102
      %p275 = pneg %p99
      %p276 = pneg %p123
      %p277 = pneg %p120
      %p278 = pneg %p153
      %p279 = pneg %p150
      %s280 = smul.u32 16, %s24
      %p281 = scmp.lt.s32.totalorder %s23, 1
      %s282 = scalar_select %p281, %s23, 1
      %p283 = scmp.lt.s32.totalorder %s25, 3
      %s284 = scalar_select %p283, %s25, 3
      %p285 = scmp.lt.s32.totalorder %s280, 31
      %s286 = scalar_select %p285, %s280, 31
      %s287 = smul.addr %s284, 32
      %s288 = sadd.s32 %s286, %s287
      %s289 = smul.addr %s282, 128
      %s290 = sadd.s32 %s288, %s289
      %s291 = smul.addr %s290, 4
      %s292 = scalar_lea.vmem %s4, %s291
      %p293 = pneg %p183
      %p294 = pneg %p180
      %s295 = smul.u32 16, %s24
      %p296 = scmp.lt.s32.totalorder %s23, 1
      %s297 = scalar_select %p296, %s23, 1
      %p298 = scmp.lt.s32.totalorder %s25, 3
      %s299 = scalar_select %p298, %s25, 3
      %p300 = scmp.lt.s32.totalorder %s295, 31
      %s301 = scalar_select %p300, %s295, 31
      %s302 = smul.addr %s299, 32
      %s303 = sadd.s32 %s301, %s302
      %s304 = smul.addr %s297, 128
      %s305 = sadd.s32 %s303, %s304
      %s306 = smul.addr %s305, 4
      %s307 = scalar_lea.vmem %s5, %s306
      %p308 = pneg %p213
      %p309 = pneg %p210
      %s310 = smul.u32 16, %s24
      %p311 = scmp.lt.s32.totalorder %s23, 1
      %s312 = scalar_select %p311, %s23, 1
      %p313 = scmp.lt.s32.totalorder %s25, 3
      %s314 = scalar_select %p313, %s25, 3
      %p315 = scmp.lt.s32.totalorder %s310, 31
      %s316 = scalar_select %p315, %s310, 31
      %s317 = smul.addr %s314, 32
      %s318 = sadd.s32 %s316, %s317
      %s319 = smul.addr %s312, 128
      %s320 = sadd.s32 %s318, %s319
      %s321 = smul.addr %s320, 4
      %s322 = scalar_lea.vmem %s6, %s321
      %s323 = smul.u32 16, %s24
      %p324 = scmp.lt.s32.totalorder %s23, 1
      %s325 = scalar_select %p324, %s23, 1
      %p326 = scmp.lt.s32.totalorder %s323, 31
      %s327 = scalar_select %p326, %s323, 31
      %s328 = smul.addr %s325, 32
      %s329 = sadd.s32 %s327, %s328
      %s330 = smul.addr %s329, 8
      %s331 = scalar_lea.vmem %s0, %s330
      %s332 = smul.u32 16, %s24
      %s333 = smul.u32 16, %s24
      %p334 = scmp.lt.s32.totalorder %s23, 1
      %s335 = scalar_select %p334, %s23, 1
      %p336 = scmp.lt.s32.totalorder %s25, 3
      %s337 = scalar_select %p336, %s25, 3
      %p338 = scmp.lt.s32.totalorder %s333, 31
      %s339 = scalar_select %p338, %s333, 31
      %s340 = smul.addr %s337, 32
      %s341 = sadd.s32 %s339, %s340
      %s342 = smul.addr %s335, 128
      %s343 = sadd.s32 %s341, %s342
      %s344 = smul.addr %s343, 4
      %s345 = scalar_lea.vmem %s4, %s344
      %s346 = smul.u32 16, %s24
      %s347 = smul.u32 16, %s24
      %p348 = scmp.lt.s32.totalorder %s23, 1
      %s349 = scalar_select %p348, %s23, 1
      %p350 = scmp.lt.s32.totalorder %s25, 3
      %s351 = scalar_select %p350, %s25, 3
      %p352 = scmp.lt.s32.totalorder %s347, 31
      %s353 = scalar_select %p352, %s347, 31
      %s354 = smul.addr %s351, 32
      %s355 = sadd.s32 %s353, %s354
      %s356 = smul.addr %s349, 128
      %s357 = sadd.s32 %s355, %s356
      %s358 = smul.addr %s357, 4
      %s359 = scalar_lea.vmem %s5, %s358
      %s360 = smul.u32 16, %s24
      %s361 = smul.u32 16, %s24
      %p362 = scmp.lt.s32.totalorder %s23, 1
      %s363 = scalar_select %p362, %s23, 1
      %p364 = scmp.lt.s32.totalorder %s25, 3
      %s365 = scalar_select %p364, %s25, 3
      %p366 = scmp.lt.s32.totalorder %s361, 31
      %s367 = scalar_select %p366, %s361, 31
      %s368 = smul.addr %s365, 32
      %s369 = sadd.s32 %s367, %s368
      %s370 = smul.addr %s363, 128
      %s371 = sadd.s32 %s369, %s370
      %s372 = smul.addr %s371, 4
      %s373 = scalar_lea.vmem %s6, %s372
      %s374 = smul.u32 16, %s24
      %v375 = vld [vmem:[%s331] sm:$0xff]
      %v376 = vld [vmem:[%s331 + $0x8] sm:$0xff]
      %v377 = vld [vmem:[%s331 + $0x10] sm:$0xff]
      %v378 = vld [vmem:[%s331 + $0x18] sm:$0xff]
      %v379 = vld [vmem:[%s331 + $0x20] sm:$0xff]
      %v380 = vld [vmem:[%s331 + $0x28] sm:$0xff]
      %v381 = vld [vmem:[%s331 + $0x30] sm:$0xff]
      %v382 = vld [vmem:[%s331 + $0x38] sm:$0xff]
      %v383 = vld [vmem:[%s331 + $0x40] sm:$0xff]
      %v384 = vld [vmem:[%s331 + $0x48] sm:$0xff]
      %v385 = vld [vmem:[%s331 + $0x50] sm:$0xff]
      %v386 = vld [vmem:[%s331 + $0x58] sm:$0xff]
      %v387 = vld [vmem:[%s331 + $0x60] sm:$0xff]
      %v388 = vld [vmem:[%s331 + $0x68] sm:$0xff]
      %v389 = vld [vmem:[%s331 + $0x70] sm:$0xff]
      %v390 = vld [vmem:[%s331 + $0x78] sm:$0xff]
      %v391 = vpack.c.bf16 %v376, %v375
      %v392 = vpack.c.bf16 %v378, %v377
      %v393 = vpack.c.bf16 %v380, %v379
      %v394 = vpack.c.bf16 %v382, %v381
      %v395 = vpack.c.bf16 %v384, %v383
      %v396 = vpack.c.bf16 %v386, %v385
      %v397 = vpack.c.bf16 %v388, %v387
      %v398 = vpack.c.bf16 %v390, %v389
      %s399 = smul.u32 %s25, 16
      %s400 = smul.addr %s399, 4
      %s401 = scalar_lea.vmem %s1, %s400
      %v402 = vld [vmem:[%s401] sm:$0xf]
      %v403 = vld [vmem:[%s401 + $0x4] sm:$0xf]
      %v404 = vld [vmem:[%s401 + $0x8] sm:$0xf]
      %v405 = vld [vmem:[%s401 + $0xc] sm:$0xf]
      %v406 = vld [vmem:[%s401 + $0x10] sm:$0xf]
      %v407 = vld [vmem:[%s401 + $0x14] sm:$0xf]
      %v408 = vld [vmem:[%s401 + $0x18] sm:$0xf]
      %v409 = vld [vmem:[%s401 + $0x1c] sm:$0xf]
      %v410 = vld [vmem:[%s401 + $0x20] sm:$0xf]
      %v411 = vld [vmem:[%s401 + $0x24] sm:$0xf]
      %v412 = vld [vmem:[%s401 + $0x28] sm:$0xf]
      %v413 = vld [vmem:[%s401 + $0x2c] sm:$0xf]
      %v414 = vld [vmem:[%s401 + $0x30] sm:$0xf]
      %v415 = vld [vmem:[%s401 + $0x34] sm:$0xf]
      %v416 = vld [vmem:[%s401 + $0x38] sm:$0xf]
      %v417 = vld [vmem:[%s401 + $0x3c] sm:$0xf]
      %v434 = vunpack.c.l.b16 %v402
      %v435 = vunpack.c.l.b16 %v403
      %v436 = vunpack.c.l.b16 %v404
      %v437 = vunpack.c.l.b16 %v405
      %v438 = vunpack.c.l.b16 %v406
      %v439 = vunpack.c.l.b16 %v407
      %v440 = vunpack.c.l.b16 %v408
      %v441 = vunpack.c.l.b16 %v409
      %v442 = vunpack.c.l.b16 %v410
      %v443 = vunpack.c.l.b16 %v411
      %v444 = vunpack.c.l.b16 %v412
      %v445 = vunpack.c.l.b16 %v413
      %v446 = vunpack.c.l.b16 %v414
      %v447 = vunpack.c.l.b16 %v415
      %v448 = vunpack.c.l.b16 %v416
      %v449 = vunpack.c.l.b16 %v417
      %v450 = vpack.c.b16 %v435, %v434
      %v451 = vpack.c.b16 %v437, %v436
      %v452 = vpack.c.b16 %v439, %v438
      %v453 = vpack.c.b16 %v441, %v440
      %v454 = vpack.c.b16 %v443, %v442
      %v455 = vpack.c.b16 %v445, %v444
      %v456 = vpack.c.b16 %v447, %v446
      %v457 = vpack.c.b16 %v449, %v448
      %466 = vmatpush.bf16.msra.mxu0 %v457
      %467 = vmatpush.bf16.msra.mxu0 %v456
      %468 = vmatpush.bf16.msra.mxu0 %v455
      %469 = vmatpush.bf16.msra.mxu0 %v454
      %470 = vmatpush.bf16.msra.mxu0 %v453
      %471 = vmatpush.bf16.msra.mxu0 %v452
      %472 = vmatpush.bf16.msra.mxu0 %v451
      %473 = vmatpush.bf16.msra.mxu0 %v450
      %474 = vmatmul.bf16.gmra.mxu0 %v391
      %v475 = vpop.f32.mrf.mxu0
      %v476 = vadd.f32 0.0, %v475
      %v477 = vpop.f32.mrf.mxu0
      %v478 = vadd.f32 0.0, %v477
      %479 = vmatmul.bf16.gmra.mxu0 %v392
      %v480 = vpop.f32.mrf.mxu0
      %v481 = vadd.f32 0.0, %v480
      %v482 = vpop.f32.mrf.mxu0
      %v483 = vadd.f32 0.0, %v482
      %484 = vmatmul.bf16.gmra.mxu0 %v393
      %v485 = vpop.f32.mrf.mxu0
      %v486 = vadd.f32 0.0, %v485
      %v487 = vpop.f32.mrf.mxu0
      %v488 = vadd.f32 0.0, %v487
      %489 = vmatmul.bf16.gmra.mxu0 %v394
      %v490 = vpop.f32.mrf.mxu0
      %v491 = vadd.f32 0.0, %v490
      %v492 = vpop.f32.mrf.mxu0
      %v493 = vadd.f32 0.0, %v492
      %494 = vmatmul.bf16.gmra.mxu0 %v395
      %v495 = vpop.f32.mrf.mxu0
      %v496 = vadd.f32 0.0, %v495
      %v497 = vpop.f32.mrf.mxu0
      %v498 = vadd.f32 0.0, %v497
      %499 = vmatmul.bf16.gmra.mxu0 %v396
      %v500 = vpop.f32.mrf.mxu0
      %v501 = vadd.f32 0.0, %v500
      %v502 = vpop.f32.mrf.mxu0
      %v503 = vadd.f32 0.0, %v502
      %504 = vmatmul.bf16.gmra.mxu0 %v397
      %v505 = vpop.f32.mrf.mxu0
      %v506 = vadd.f32 0.0, %v505
      %v507 = vpop.f32.mrf.mxu0
      %v508 = vadd.f32 0.0, %v507
      %509 = vmatmul.bf16.gmra.mxu0 %v398
      %v510 = vpop.f32.mrf.mxu0
      %v511 = vadd.f32 0.0, %v510
      %v512 = vpop.f32.mrf.mxu0
      %v513 = vadd.f32 0.0, %v512
      %514 = vdwg.mxu0
      %s515 = smul.addr %s399, 4
      %s516 = scalar_lea.vmem %s2, %s515
      %v517 = vld [vmem:[%s516] sm:$0xf]
      %v518 = vld [vmem:[%s516 + $0x4] sm:$0xf]
      %v519 = vld [vmem:[%s516 + $0x8] sm:$0xf]
      %v520 = vld [vmem:[%s516 + $0xc] sm:$0xf]
      %v521 = vld [vmem:[%s516 + $0x10] sm:$0xf]
      %v522 = vld [vmem:[%s516 + $0x14] sm:$0xf]
      %v523 = vld [vmem:[%s516 + $0x18] sm:$0xf]
      %v524 = vld [vmem:[%s516 + $0x1c] sm:$0xf]
      %v525 = vld [vmem:[%s516 + $0x20] sm:$0xf]
      %v526 = vld [vmem:[%s516 + $0x24] sm:$0xf]
      %v527 = vld [vmem:[%s516 + $0x28] sm:$0xf]
      %v528 = vld [vmem:[%s516 + $0x2c] sm:$0xf]
      %v529 = vld [vmem:[%s516 + $0x30] sm:$0xf]
      %v530 = vld [vmem:[%s516 + $0x34] sm:$0xf]
      %v531 = vld [vmem:[%s516 + $0x38] sm:$0xf]
      %v532 = vld [vmem:[%s516 + $0x3c] sm:$0xf]
      %v549 = vunpack.c.l.b16 %v517
      %v550 = vunpack.c.l.b16 %v518
      %v551 = vunpack.c.l.b16 %v519
      %v552 = vunpack.c.l.b16 %v520
      %v553 = vunpack.c.l.b16 %v521
      %v554 = vunpack.c.l.b16 %v522
      %v555 = vunpack.c.l.b16 %v523
      %v556 = vunpack.c.l.b16 %v524
      %v557 = vunpack.c.l.b16 %v525
      %v558 = vunpack.c.l.b16 %v526
      %v559 = vunpack.c.l.b16 %v527
      %v560 = vunpack.c.l.b16 %v528
      %v561 = vunpack.c.l.b16 %v529
      %v562 = vunpack.c.l.b16 %v530
      %v563 = vunpack.c.l.b16 %v531
      %v564 = vunpack.c.l.b16 %v532
      %v565 = vpack.c.b16 %v550, %v549
      %v566 = vpack.c.b16 %v552, %v551
      %v567 = vpack.c.b16 %v554, %v553
      %v568 = vpack.c.b16 %v556, %v555
      %v569 = vpack.c.b16 %v558, %v557
      %v570 = vpack.c.b16 %v560, %v559
      %v571 = vpack.c.b16 %v562, %v561
      %v572 = vpack.c.b16 %v564, %v563
      %581 = vmatpush.bf16.msra.mxu0 %v572
      %582 = vmatpush.bf16.msra.mxu0 %v571
      %583 = vmatpush.bf16.msra.mxu0 %v570
      %584 = vmatpush.bf16.msra.mxu0 %v569
      %585 = vmatpush.bf16.msra.mxu0 %v568
      %586 = vmatpush.bf16.msra.mxu0 %v567
      %587 = vmatpush.bf16.msra.mxu0 %v566
      %588 = vmatpush.bf16.msra.mxu0 %v565
      %589 = vmatmul.bf16.gmra.mxu0 %v391
      %v590 = vpop.f32.mrf.mxu0
      %v591 = vadd.f32 0.0, %v590
      %v592 = vpop.f32.mrf.mxu0
      %v593 = vadd.f32 0.0, %v592
      %594 = vmatmul.bf16.gmra.mxu0 %v392
      %v595 = vpop.f32.mrf.mxu0
      %v596 = vadd.f32 0.0, %v595
      %v597 = vpop.f32.mrf.mxu0
      %v598 = vadd.f32 0.0, %v597
      %599 = vmatmul.bf16.gmra.mxu0 %v393
      %v600 = vpop.f32.mrf.mxu0
      %v601 = vadd.f32 0.0, %v600
      %v602 = vpop.f32.mrf.mxu0
      %v603 = vadd.f32 0.0, %v602
      %604 = vmatmul.bf16.gmra.mxu0 %v394
      %v605 = vpop.f32.mrf.mxu0
      %v606 = vadd.f32 0.0, %v605
      %v607 = vpop.f32.mrf.mxu0
      %v608 = vadd.f32 0.0, %v607
      %609 = vmatmul.bf16.gmra.mxu0 %v395
      %v610 = vpop.f32.mrf.mxu0
      %v611 = vadd.f32 0.0, %v610
      %v612 = vpop.f32.mrf.mxu0
      %v613 = vadd.f32 0.0, %v612
      %614 = vmatmul.bf16.gmra.mxu0 %v396
      %v615 = vpop.f32.mrf.mxu0
      %v616 = vadd.f32 0.0, %v615
      %v617 = vpop.f32.mrf.mxu0
      %v618 = vadd.f32 0.0, %v617
      %619 = vmatmul.bf16.gmra.mxu0 %v397
      %v620 = vpop.f32.mrf.mxu0
      %v621 = vadd.f32 0.0, %v620
      %v622 = vpop.f32.mrf.mxu0
      %v623 = vadd.f32 0.0, %v622
      %624 = vmatmul.bf16.gmra.mxu0 %v398
      %v625 = vpop.f32.mrf.mxu0
      %v626 = vadd.f32 0.0, %v625
      %v627 = vpop.f32.mrf.mxu0
      %v628 = vadd.f32 0.0, %v627
      %629 = vdwg.mxu0
      %s630 = smul.addr %s399, 4
      %s631 = scalar_lea.vmem %s3, %s630
      %v632 = vld [vmem:[%s631] sm:$0xf]
      %v633 = vld [vmem:[%s631 + $0x4] sm:$0xf]
      %v634 = vld [vmem:[%s631 + $0x8] sm:$0xf]
      %v635 = vld [vmem:[%s631 + $0xc] sm:$0xf]
      %v636 = vld [vmem:[%s631 + $0x10] sm:$0xf]
      %v637 = vld [vmem:[%s631 + $0x14] sm:$0xf]
      %v638 = vld [vmem:[%s631 + $0x18] sm:$0xf]
      %v639 = vld [vmem:[%s631 + $0x1c] sm:$0xf]
      %v640 = vld [vmem:[%s631 + $0x20] sm:$0xf]
      %v641 = vld [vmem:[%s631 + $0x24] sm:$0xf]
      %v642 = vld [vmem:[%s631 + $0x28] sm:$0xf]
      %v643 = vld [vmem:[%s631 + $0x2c] sm:$0xf]
      %v644 = vld [vmem:[%s631 + $0x30] sm:$0xf]
      %v645 = vld [vmem:[%s631 + $0x34] sm:$0xf]
      %v646 = vld [vmem:[%s631 + $0x38] sm:$0xf]
      %v647 = vld [vmem:[%s631 + $0x3c] sm:$0xf]
      %v664 = vunpack.c.l.b16 %v632
      %v665 = vunpack.c.l.b16 %v633
      %v666 = vunpack.c.l.b16 %v634
      %v667 = vunpack.c.l.b16 %v635
      %v668 = vunpack.c.l.b16 %v636
      %v669 = vunpack.c.l.b16 %v637
      %v670 = vunpack.c.l.b16 %v638
      %v671 = vunpack.c.l.b16 %v639
      %v672 = vunpack.c.l.b16 %v640
      %v673 = vunpack.c.l.b16 %v641
      %v674 = vunpack.c.l.b16 %v642
      %v675 = vunpack.c.l.b16 %v643
      %v676 = vunpack.c.l.b16 %v644
      %v677 = vunpack.c.l.b16 %v645
      %v678 = vunpack.c.l.b16 %v646
      %v679 = vunpack.c.l.b16 %v647
      %v680 = vpack.c.b16 %v665, %v664
      %v681 = vpack.c.b16 %v667, %v666
      %v682 = vpack.c.b16 %v669, %v668
      %v683 = vpack.c.b16 %v671, %v670
      %v684 = vpack.c.b16 %v673, %v672
      %v685 = vpack.c.b16 %v675, %v674
      %v686 = vpack.c.b16 %v677, %v676
      %v687 = vpack.c.b16 %v679, %v678
      %696 = vmatpush.bf16.msra.mxu0 %v687
      %697 = vmatpush.bf16.msra.mxu0 %v686
      %698 = vmatpush.bf16.msra.mxu0 %v685
      %699 = vmatpush.bf16.msra.mxu0 %v684
      %700 = vmatpush.bf16.msra.mxu0 %v683
      %701 = vmatpush.bf16.msra.mxu0 %v682
      %702 = vmatpush.bf16.msra.mxu0 %v681
      %703 = vmatpush.bf16.msra.mxu0 %v680
      %704 = vmatmul.bf16.gmra.mxu0 %v391
      %v705 = vpop.f32.mrf.mxu0
      %v706 = vadd.f32 0.0, %v705
      %v707 = vpop.f32.mrf.mxu0
      %v708 = vadd.f32 0.0, %v707
      %709 = vmatmul.bf16.gmra.mxu0 %v392
      %v710 = vpop.f32.mrf.mxu0
      %v711 = vadd.f32 0.0, %v710
      %v712 = vpop.f32.mrf.mxu0
      %v713 = vadd.f32 0.0, %v712
      %714 = vmatmul.bf16.gmra.mxu0 %v393
      %v715 = vpop.f32.mrf.mxu0
      %v716 = vadd.f32 0.0, %v715
      %v717 = vpop.f32.mrf.mxu0
      %v718 = vadd.f32 0.0, %v717
      %719 = vmatmul.bf16.gmra.mxu0 %v394
      %v720 = vpop.f32.mrf.mxu0
      %v721 = vadd.f32 0.0, %v720
      %v722 = vpop.f32.mrf.mxu0
      %v723 = vadd.f32 0.0, %v722
      %724 = vmatmul.bf16.gmra.mxu0 %v395
      %v725 = vpop.f32.mrf.mxu0
      %v726 = vadd.f32 0.0, %v725
      %v727 = vpop.f32.mrf.mxu0
      %v728 = vadd.f32 0.0, %v727
      %729 = vmatmul.bf16.gmra.mxu0 %v396
      %v730 = vpop.f32.mrf.mxu0
      %v731 = vadd.f32 0.0, %v730
      %v732 = vpop.f32.mrf.mxu0
      %v733 = vadd.f32 0.0, %v732
      %734 = vmatmul.bf16.gmra.mxu0 %v397
      %v735 = vpop.f32.mrf.mxu0
      %v736 = vadd.f32 0.0, %v735
      %v737 = vpop.f32.mrf.mxu0
      %v738 = vadd.f32 0.0, %v737
      %739 = vmatmul.bf16.gmra.mxu0 %v398
      %v740 = vpop.f32.mrf.mxu0
      %v741 = vadd.f32 0.0, %v740
      %v742 = vpop.f32.mrf.mxu0
      %v743 = vadd.f32 0.0, %v742
      %744 = vdwg.mxu0
      %v745 = vpack.c.bf16 %v476, %v476
      %v746 = vpack.c.bf16 %v478, %v478
      %v747 = vpack.c.bf16 %v481, %v481
      %v748 = vpack.c.bf16 %v483, %v483
      %v749 = vpack.c.bf16 %v486, %v486
      %v750 = vpack.c.bf16 %v488, %v488
      %v751 = vpack.c.bf16 %v491, %v491
      %v752 = vpack.c.bf16 %v493, %v493
      %v753 = vpack.c.bf16 %v496, %v496
      %v754 = vpack.c.bf16 %v498, %v498
      %v755 = vpack.c.bf16 %v501, %v501
      %v756 = vpack.c.bf16 %v503, %v503
      %v757 = vpack.c.bf16 %v506, %v506
      %v758 = vpack.c.bf16 %v508, %v508
      %v759 = vpack.c.bf16 %v511, %v511
      %v760 = vpack.c.bf16 %v513, %v513
      %vm761 = vcmask 257024
      %762 = vst.msk [vmem:[%s345] sm:$0xf] %vm761, %v745
      %763 = vst.msk [vmem:[%s345 + $0x4] sm:$0xf] %vm761, %v746
      %764 = vst.msk [vmem:[%s345 + $0x8] sm:$0xf] %vm761, %v747
      %765 = vst.msk [vmem:[%s345 + $0xc] sm:$0xf] %vm761, %v748
      %766 = vst.msk [vmem:[%s345 + $0x10] sm:$0xf] %vm761, %v749
      %767 = vst.msk [vmem:[%s345 + $0x14] sm:$0xf] %vm761, %v750
      %768 = vst.msk [vmem:[%s345 + $0x18] sm:$0xf] %vm761, %v751
      %769 = vst.msk [vmem:[%s345 + $0x1c] sm:$0xf] %vm761, %v752
      %770 = vst.msk [vmem:[%s345 + $0x20] sm:$0xf] %vm761, %v753
      %771 = vst.msk [vmem:[%s345 + $0x24] sm:$0xf] %vm761, %v754
      %772 = vst.msk [vmem:[%s345 + $0x28] sm:$0xf] %vm761, %v755
      %773 = vst.msk [vmem:[%s345 + $0x2c] sm:$0xf] %vm761, %v756
      %774 = vst.msk [vmem:[%s345 + $0x30] sm:$0xf] %vm761, %v757
      %775 = vst.msk [vmem:[%s345 + $0x34] sm:$0xf] %vm761, %v758
      %776 = vst.msk [vmem:[%s345 + $0x38] sm:$0xf] %vm761, %v759
      %777 = vst.msk [vmem:[%s345 + $0x3c] sm:$0xf] %vm761, %v760
      %v778 = vpack.c.bf16 %v591, %v591
      %v779 = vpack.c.bf16 %v593, %v593
      %v780 = vpack.c.bf16 %v596, %v596
      %v781 = vpack.c.bf16 %v598, %v598
      %v782 = vpack.c.bf16 %v601, %v601
      %v783 = vpack.c.bf16 %v603, %v603
      %v784 = vpack.c.bf16 %v606, %v606
      %v785 = vpack.c.bf16 %v608, %v608
      %v786 = vpack.c.bf16 %v611, %v611
      %v787 = vpack.c.bf16 %v613, %v613
      %v788 = vpack.c.bf16 %v616, %v616
      %v789 = vpack.c.bf16 %v618, %v618
      %v790 = vpack.c.bf16 %v621, %v621
      %v791 = vpack.c.bf16 %v623, %v623
      %v792 = vpack.c.bf16 %v626, %v626
      %v793 = vpack.c.bf16 %v628, %v628
      %794 = vst.msk [vmem:[%s359] sm:$0xf] %vm761, %v778
      %795 = vst.msk [vmem:[%s359 + $0x4] sm:$0xf] %vm761, %v779
      %796 = vst.msk [vmem:[%s359 + $0x8] sm:$0xf] %vm761, %v780
      %797 = vst.msk [vmem:[%s359 + $0xc] sm:$0xf] %vm761, %v781
      %798 = vst.msk [vmem:[%s359 + $0x10] sm:$0xf] %vm761, %v782
      %799 = vst.msk [vmem:[%s359 + $0x14] sm:$0xf] %vm761, %v783
      %800 = vst.msk [vmem:[%s359 + $0x18] sm:$0xf] %vm761, %v784
      %801 = vst.msk [vmem:[%s359 + $0x1c] sm:$0xf] %vm761, %v785
      %802 = vst.msk [vmem:[%s359 + $0x20] sm:$0xf] %vm761, %v786
      %803 = vst.msk [vmem:[%s359 + $0x24] sm:$0xf] %vm761, %v787
      %804 = vst.msk [vmem:[%s359 + $0x28] sm:$0xf] %vm761, %v788
      %805 = vst.msk [vmem:[%s359 + $0x2c] sm:$0xf] %vm761, %v789
      %806 = vst.msk [vmem:[%s359 + $0x30] sm:$0xf] %vm761, %v790
      %807 = vst.msk [vmem:[%s359 + $0x34] sm:$0xf] %vm761, %v791
      %808 = vst.msk [vmem:[%s359 + $0x38] sm:$0xf] %vm761, %v792
      %809 = vst.msk [vmem:[%s359 + $0x3c] sm:$0xf] %vm761, %v793
      %v810 = vpack.c.bf16 %v706, %v706
      %v811 = vpack.c.bf16 %v708, %v708
      %v812 = vpack.c.bf16 %v711, %v711
      %v813 = vpack.c.bf16 %v713, %v713
      %v814 = vpack.c.bf16 %v716, %v716
      %v815 = vpack.c.bf16 %v718, %v718
      %v816 = vpack.c.bf16 %v721, %v721
      %v817 = vpack.c.bf16 %v723, %v723
      %v818 = vpack.c.bf16 %v726, %v726
      %v819 = vpack.c.bf16 %v728, %v728
      %v820 = vpack.c.bf16 %v731, %v731
      %v821 = vpack.c.bf16 %v733, %v733
      %v822 = vpack.c.bf16 %v736, %v736
      %v823 = vpack.c.bf16 %v738, %v738
      %v824 = vpack.c.bf16 %v741, %v741
      %v825 = vpack.c.bf16 %v743, %v743
      %826 = vst.msk [vmem:[%s373] sm:$0xf] %vm761, %v810
      %827 = vst.msk [vmem:[%s373 + $0x4] sm:$0xf] %vm761, %v811
      %828 = vst.msk [vmem:[%s373 + $0x8] sm:$0xf] %vm761, %v812
      %829 = vst.msk [vmem:[%s373 + $0xc] sm:$0xf] %vm761, %v813
      %830 = vst.msk [vmem:[%s373 + $0x10] sm:$0xf] %vm761, %v814
      %831 = vst.msk [vmem:[%s373 + $0x14] sm:$0xf] %vm761, %v815
      %832 = vst.msk [vmem:[%s373 + $0x18] sm:$0xf] %vm761, %v816
      %833 = vst.msk [vmem:[%s373 + $0x1c] sm:$0xf] %vm761, %v817
      %834 = vst.msk [vmem:[%s373 + $0x20] sm:$0xf] %vm761, %v818
      %835 = vst.msk [vmem:[%s373 + $0x24] sm:$0xf] %vm761, %v819
      %836 = vst.msk [vmem:[%s373 + $0x28] sm:$0xf] %vm761, %v820
      %837 = vst.msk [vmem:[%s373 + $0x2c] sm:$0xf] %vm761, %v821
      %838 = vst.msk [vmem:[%s373 + $0x30] sm:$0xf] %vm761, %v822
      %839 = vst.msk [vmem:[%s373 + $0x34] sm:$0xf] %vm761, %v823
      %840 = vst.msk [vmem:[%s373 + $0x38] sm:$0xf] %vm761, %v824
      %841 = vst.msk [vmem:[%s373 + $0x3c] sm:$0xf] %vm761, %v825
      %s842 = smul.u32 16, %s24
      %p843 = scmp.lt.s32.totalorder %s23, 1
      %s844 = scalar_select %p843, %s23, 1
      %p845 = scmp.lt.s32.totalorder %s25, 3
      %s846 = scalar_select %p845, %s25, 3
      %p847 = scmp.lt.s32.totalorder %s842, 31
      %s848 = scalar_select %p847, %s842, 31
      %s849 = smul.addr %s846, 32
      %s850 = sadd.s32 %s848, %s849
      %s851 = smul.addr %s844, 128
      %s852 = sadd.s32 %s850, %s851
      %s853 = smul.addr %s852, 4
      %s854 = scalar_lea.vmem %s4, %s853
      %s855 = smul.u32 16, %s24
      %p856 = scmp.lt.s32.totalorder %s23, 1
      %s857 = scalar_select %p856, %s23, 1
      %p858 = scmp.lt.s32.totalorder %s25, 3
      %s859 = scalar_select %p858, %s25, 3
      %p860 = scmp.lt.s32.totalorder %s855, 31
      %s861 = scalar_select %p860, %s855, 31
      %s862 = smul.addr %s859, 32
      %s863 = sadd.s32 %s861, %s862
      %s864 = smul.addr %s857, 128
      %s865 = sadd.s32 %s863, %s864
      %s866 = smul.addr %s865, 4
      %s867 = scalar_lea.vmem %s5, %s866
      %s868 = smul.u32 16, %s24
      %p869 = scmp.lt.s32.totalorder %s23, 1
      %s870 = scalar_select %p869, %s23, 1
      %p871 = scmp.lt.s32.totalorder %s25, 3
      %s872 = scalar_select %p871, %s25, 3
      %p873 = scmp.lt.s32.totalorder %s868, 31
      %s874 = scalar_select %p873, %s868, 31
      %s875 = smul.addr %s872, 32
      %s876 = sadd.s32 %s874, %s875
      %s877 = smul.addr %s870, 128
      %s878 = sadd.s32 %s876, %s877
      %s879 = smul.addr %s878, 4
      %s880 = scalar_lea.vmem %s6, %s879
      // Predicated region
      $region37: #{tpu_custom_call.1} parent=35 // pred_check
        %p881 = pneg %p150
      $region38: #{tpu_custom_call.1} parent=35 // pred_check_branch
        %883 = sbr.rel (%p881) target = $region40
      $region39: #{tpu_custom_call.1} parent=35 // pred_region
        %s884 = smul.u32 16, %s24
      $region40: #{tpu_custom_call.1} parent=35 // pred_fallthru
        _
      // Predicated region
      $region41: #{tpu_custom_call.1} parent=35 // pred_check
        %p885 = pneg %p180
      $region42: #{tpu_custom_call.1} parent=35 // pred_check_branch
        %887 = sbr.rel (%p885) target = $region44
      $region43: #{tpu_custom_call.1} parent=35 // pred_region
        %s888 = smul.u32 16, %s24
      $region44: #{tpu_custom_call.1} parent=35 // pred_fallthru
        _
      // Predicated region
      $region45: #{tpu_custom_call.1} parent=35 // pred_check
        %p889 = pneg %p210
      $region46: #{tpu_custom_call.1} parent=35 // pred_check_branch
        %891 = sbr.rel (%p889) target = $region48
      $region47: #{tpu_custom_call.1} parent=35 // pred_region
        %s892 = smul.u32 16, %s24
      $region48: #{tpu_custom_call.1} parent=35 // pred_fallthru
        _
    $region36: #{tpu_custom_call.1} parent=5 // pred_fallthru
      _
    %p893 = scmp.le.s32.totalorder 2, %s13
    // Predicated region
    $region49: #{tpu_custom_call.1} parent=5 // pred_check
      %p894 = pneg %p893
    $region50: #{tpu_custom_call.1} parent=5 // pred_check_branch
      %896 = sbr.rel (%p894) target = $region52
    $region51: #{tpu_custom_call.1} parent=5 // pred_region
      %s897 = ssub.s32 %s13, 2
      // Predicated region
      $region53: #{tpu_custom_call.1} parent=51 // pred_check
        %p898 = pneg %p156
      $region54: #{tpu_custom_call.1} parent=51 // pred_check_branch
        %900 = sbr.rel (%p898) target = $region56
      $region55: #{tpu_custom_call.1} parent=51 // pred_region
        %s901 = smul.u32 16, %s27
        %p902 = scmp.lt.s32.totalorder %s26, 1
        %s903 = scalar_select %p902, %s26, 1
        %p904 = scmp.lt.s32.totalorder %s28, 3
        %s905 = scalar_select %p904, %s28, 3
        %p906 = scmp.lt.s32.totalorder %s901, 31
        %s907 = scalar_select %p906, %s901, 31
        %s908 = smul.addr %s905, 32
        %s909 = sadd.s32 %s907, %s908
        %s910 = smul.addr %s903, 128
        %s911 = sadd.s32 %s909, %s910
        %s912 = smul.addr %s911, 4
        %s913 = scalar_lea.vmem %s4, %s912
      $region56: #{tpu_custom_call.1} parent=51 // pred_fallthru
        _
      // Predicated region
      $region57: #{tpu_custom_call.1} parent=51 // pred_check
        %p914 = pneg %p186
      $region58: #{tpu_custom_call.1} parent=51 // pred_check_branch
        %916 = sbr.rel (%p914) target = $region60
      $region59: #{tpu_custom_call.1} parent=51 // pred_region
        %s917 = smul.u32 16, %s27
        %p918 = scmp.lt.s32.totalorder %s26, 1
        %s919 = scalar_select %p918, %s26, 1
        %p920 = scmp.lt.s32.totalorder %s28, 3
        %s921 = scalar_select %p920, %s28, 3
        %p922 = scmp.lt.s32.totalorder %s917, 31
        %s923 = scalar_select %p922, %s917, 31
        %s924 = smul.addr %s921, 32
        %s925 = sadd.s32 %s923, %s924
        %s926 = smul.addr %s919, 128
        %s927 = sadd.s32 %s925, %s926
        %s928 = smul.addr %s927, 4
        %s929 = scalar_lea.vmem %s5, %s928
      $region60: #{tpu_custom_call.1} parent=51 // pred_fallthru
        _
      // Predicated region
      $region61: #{tpu_custom_call.1} parent=51 // pred_check
        %p930 = pneg %p216
      $region62: #{tpu_custom_call.1} parent=51 // pred_check_branch
        %932 = sbr.rel (%p930) target = $region64
      $region63: #{tpu_custom_call.1} parent=51 // pred_region
        %s933 = smul.u32 16, %s27
        %p934 = scmp.lt.s32.totalorder %s26, 1
        %s935 = scalar_select %p934, %s26, 1
        %p936 = scmp.lt.s32.totalorder %s28, 3
        %s937 = scalar_select %p936, %s28, 3
        %p938 = scmp.lt.s32.totalorder %s933, 31
        %s939 = scalar_select %p938, %s933, 31
        %s940 = smul.addr %s937, 32
        %s941 = sadd.s32 %s939, %s940
        %s942 = smul.addr %s935, 128
        %s943 = sadd.s32 %s941, %s942
        %s944 = smul.addr %s943, 4
        %s945 = scalar_lea.vmem %s6, %s944
      $region64: #{tpu_custom_call.1} parent=51 // pred_fallthru
        _
    $region52: #{tpu_custom_call.1} parent=5 // pred_fallthru
      _
  $region6: #{tpu_custom_call.1} parent=0 // loop_footer
    %s17 = sadd.s32 1, %s13
  $region7: #{tpu_custom_call.1} parent=0 // loop_footer_branch
    %12 = sbr.rel target = $region3
  $region8: #{tpu_custom_call.1} parent=0 // loop_exit
    _

</llo_original>
